<compile_context>
chip_gen: v6e
topology: v6e:2x2x1
jax: 0.10.0
libtpu: 0.0.40
codegen_flags: <defaults>
</compile_context>

<pallas_src>
import functools
import math

import jax
import jax.numpy as jnp
import numpy as np
from jax.experimental import pallas as pl
from jax.experimental.pallas import tpu as pltpu


# ----------------------------- Pallas kernel ------------------------------ #
def _ray_kernel(params_ref, xy_ref, out_ref):
    """One (camera, ray-tile) grid step.

    params_ref: (B, 16) f32 in SMEM  [R(9, row-major), T(3), fx, fy, px, py]
    xy_ref:     (1, 2, T) f32 VMEM   lane-dense xy for this ray tile
    out_ref:    (1, 8, T) f32 VMEM   rows 0-2 origin, 3-5 unit dir, 6-7 pad
    """
    b = pl.program_id(0)

    xy = xy_ref[0]                      # (2, T)
    x = xy[0:1, :]                      # (1, T)
    y = xy[1:2, :]                      # (1, T)

    # camera scalars from SMEM
    r00 = params_ref[b, 0]; r01 = params_ref[b, 1]; r02 = params_ref[b, 2]
    r10 = params_ref[b, 3]; r11 = params_ref[b, 4]; r12 = params_ref[b, 5]
    r20 = params_ref[b, 6]; r21 = params_ref[b, 7]; r22 = params_ref[b, 8]
    tx = params_ref[b, 9]; ty = params_ref[b, 10]; tz = params_ref[b, 11]
    fx = params_ref[b, 12]; fy = params_ref[b, 13]
    px = params_ref[b, 14]; py = params_ref[b, 15]

    # camera-frame point on the depth=1 plane
    cx = (x - px) / fx
    cy = (y - py) / fy

    # world2 - world1 = R @ (cam2 - cam1) = R @ (cx, cy, 1)
    dx = r00 * cx + r01 * cy + r02
    dy = r10 * cx + r11 * cy + r12
    dz = r20 * cx + r21 * cy + r22

    # origin = world1 - direction = R @ (cam1 - T) - R @ cam1 = -R @ T
    # (per-camera constant; computed once per grid step on the scalar path)
    ox = -(r00 * tx + r01 * ty + r02 * tz)
    oy = -(r10 * tx + r11 * ty + r12 * tz)
    oz = -(r20 * tx + r21 * ty + r22 * tz)

    # torch.nn.functional.normalize(dim=-1, eps=1e-12): clamp ||v||^2 at 1e-24
    nsq = dx * dx + dy * dy + dz * dz
    inv = jax.lax.rsqrt(jnp.maximum(nsq, 1e-24))

    t = out_ref.shape[2]
    out_ref[0] = jnp.concatenate(
        [
            jnp.broadcast_to(ox, (1, t)),
            jnp.broadcast_to(oy, (1, t)),
            jnp.broadcast_to(oz, (1, t)),
            dx * inv,
            dy * inv,
            dz * inv,
            jnp.zeros((2, t), jnp.float32),       # sublane padding rows
        ],
        axis=0,
    )

    # TODO(synk): stratified / stratified_test depth jitter (torch.rand_like)
    # not implemented; module flags default to False (eval path).


# ------------------------------- Wrapper ----------------------------------- #
def nerf_raysampler_forward(
    camera_params,           # (B, 16) = [R(9 row-major), T(3), fx, fy, px, py]
    rays_xy,                 # (B, H, W, 2) float32 (any spatial layout, ..., 2)
    *,
    min_depth,
    max_depth,
    n_pts_per_ray,
    chunksize=None,
    chunk_idx=0,
    ray_tile=512,            # ray-tile size (multiple of 128); sweep per chip
):
    B = rays_xy.shape[0]
    spatial = rays_xy.shape[1:-1]
    n_rays = int(np.prod(spatial))
    xy_flat = rays_xy.reshape(B, n_rays, 2).astype(jnp.float32)

    # --- static chunk selection (mirrors the torch module exactly) ---
    n_pixels = n_rays
    if chunksize is None:
        chunksize = n_pixels
    batched_chunksize = math.ceil(chunksize / B)
    start = chunk_idx * batched_chunksize
    end = min(start + batched_chunksize, n_pixels)
    n_sel = max(end - start, 0)

    # lengths is ray-independent: broadcast lazily in the wrapper (no kernel I/O)
    lengths = jnp.broadcast_to(
        jnp.linspace(min_depth, max_depth, n_pts_per_ray, dtype=jnp.float32)[None, None],
        (B, n_sel, n_pts_per_ray),
    )
    xys = xy_flat[:, start:end]

    if n_sel == 0:
        z3 = jnp.zeros((B, 0, 3), jnp.float32)
        return z3, z3, lengths, xys

    # Only compute ray tiles intersecting the requested chunk.
    tile = max(128, min(int(ray_tile), pl.cdiv(n_rays, 128) * 128))
    tile_start = start // tile
    tile_end = pl.cdiv(end, tile)
    n_tiles = tile_end - tile_start

    # Lane-dense xy restricted to the needed tiles, padded to a tile multiple.
    lo = tile_start * tile
    hi = min(tile_end * tile, n_rays)
    xy_sel = jnp.transpose(xy_flat[:, lo:hi], (0, 2, 1))     # (B, 2, hi-lo)
    pad = n_tiles * tile - (hi - lo)
    if pad:
        xy_sel = jnp.pad(xy_sel, ((0, 0), (0, 0), (0, pad)))

    packed = pl.pallas_call(
        _ray_kernel,
        out_shape=jax.ShapeDtypeStruct((B, 8, n_tiles * tile), jnp.float32),
        grid_spec=pltpu.PrefetchScalarGridSpec(
            num_scalar_prefetch=0,
            grid=(B, n_tiles),
            in_specs=[
                pl.BlockSpec(memory_space=pltpu.MemorySpace.SMEM),     # camera params
                pl.BlockSpec((1, 2, tile), lambda b, t: (b, 0, t)),    # xy tile
            ],
            out_specs=pl.BlockSpec((1, 8, tile), lambda b, t: (b, 0, t)),
        ),
        compiler_params=pltpu.CompilerParams(
            dimension_semantics=("parallel", "parallel"),
        ),
    )(camera_params.astype(jnp.float32), xy_sel)

    # Slice the chunk out of the packed lane-dense result; only the selected
    # (chunk-sized) slice is transposed back to the PyTorch (B, n_sel, 3) layout.
    ls = start - lo
    le = end - lo
    origins = jnp.transpose(packed[:, 0:3, ls:le], (0, 2, 1))
    directions = jnp.transpose(packed[:, 3:6, ls:le], (0, 2, 1))
    return origins, directions, lengths, xys


# --------------------------- Pure-JAX reference ---------------------------- #
def reference_forward(camera_params, rays_xy, *, min_depth, max_depth,
                      n_pts_per_ray, chunksize=None, chunk_idx=0):
    B = rays_xy.shape[0]
    n_rays = int(np.prod(rays_xy.shape[1:-1]))
    xy = rays_xy.reshape(B, n_rays, 2).astype(jnp.float32)
    R = camera_params[:, :9].reshape(B, 3, 3)
    T = camera_params[:, 9:12]
    f = camera_params[:, 12:14]
    p = camera_params[:, 14:16]

    def unproject(xy_depth):
        d = xy_depth[..., 2:3]
        cam_xy = (xy_depth[..., :2] - p[:, None]) * d / f[:, None]
        cam = jnp.concatenate([cam_xy, d], -1)
        return jnp.einsum("bnj,bij->bni", cam - T[:, None], R)

    ones = jnp.ones((B, n_rays, 1), jnp.float32)
    p1 = unproject(jnp.concatenate([xy, ones], -1))
    p2 = unproject(jnp.concatenate([xy, 2.0 * ones], -1))
    dirs = p2 - p1
    origins = p1 - dirs
    dirs = dirs / jnp.maximum(
        jnp.linalg.norm(dirs, axis=-1, keepdims=True), 1e-12
    )
    lengths = jnp.broadcast_to(
        jnp.linspace(min_depth, max_depth, n_pts_per_ray, dtype=jnp.float32)[None, None],
        (B, n_rays, n_pts_per_ray),
    )
    n_pixels = n_rays
    if chunksize is None:
        chunksize = n_pixels
    bc = math.ceil(chunksize / B)
    start = chunk_idx * bc
    end = min(start + bc, n_pixels)
    sel = slice(start, end)
    return (origins[:, sel], dirs[:, sel], lengths[:, sel], xy[:, sel])


# --------------------------------- Main ------------------------------------ #
if __name__ == "__main__":
    B, H, W = 2, 16, 16
    n_pts_per_ray = 8
    min_depth, max_depth = 0.1, 4.0

    key = jax.random.PRNGKey(0)
    rays_xy = jax.random.uniform(key, (B, H, W, 2), jnp.float32, -1.0, 1.0)

    # Deterministic camera params: rotation about z by 0.1*(b+1), fixed T, f, p.
    params = []
    for b in range(B):
        th = 0.1 * (b + 1)
        c, s = math.cos(th), math.sin(th)
        R = np.array([[c, -s, 0.0], [s, c, 0.0], [0.0, 0.0, 1.0]], np.float32)
        T = np.array([0.1 * b, 0.2, 3.0], np.float32)
        fp = np.array([1.5, 1.5, 0.0, 0.0], np.float32)  # fx, fy, px, py
        params.append(np.concatenate([R.reshape(-1), T, fp]))
    camera_params = jnp.asarray(np.stack(params))        # (B, 16)

    # Case 1: default chunking (chunksize=None, chunk_idx=0)
    out0 = jax.block_until_ready(nerf_raysampler_forward(
        camera_params, rays_xy,
        min_depth=min_depth, max_depth=max_depth,
        n_pts_per_ray=n_pts_per_ray, chunksize=None, chunk_idx=0,
    ))
    ref0 = reference_forward(
        camera_params, rays_xy,
        min_depth=min_depth, max_depth=max_depth,
        n_pts_per_ray=n_pts_per_ray, chunksize=None, chunk_idx=0,
    )
    for o, r in zip(out0, ref0):
        np.testing.assert_allclose(np.asarray(o), np.asarray(r), rtol=1e-5, atol=1e-5)

    # Case 2: second chunk with a small ray tile (exercises the tile-offset path)
    out1 = jax.block_until_ready(nerf_raysampler_forward(
        camera_params, rays_xy,
        min_depth=min_depth, max_depth=max_depth,
        n_pts_per_ray=n_pts_per_ray, chunksize=None, chunk_idx=1,
        ray_tile=128,
    ))
    ref1 = reference_forward(
        camera_params, rays_xy,
        min_depth=min_depth, max_depth=max_depth,
        n_pts_per_ray=n_pts_per_ray, chunksize=None, chunk_idx=1,
    )
    for o, r in zip(out1, ref1):
        np.testing.assert_allclose(np.asarray(o), np.asarray(r), rtol=1e-5, atol=1e-5)

    print("KERNEL_OK")
</pallas_src>

<mosaic_0001>
module attributes {stable_mosaic.version = 11 : i64} {
  func.func @_ray_kernel(%arg0: i32, %arg1: i32, %arg2: memref<2x16xf32, #tpu.memory_space<smem>>, %arg3: memref<1x2x256xf32, #tpu.memory_space<vmem>>, %arg4: memref<1x8x256xf32, #tpu.memory_space<vmem>>) attributes {dimension_semantics = [#tpu.dimension_semantics<parallel>, #tpu.dimension_semantics<parallel>], iteration_bounds = array<i64: 2, 1>, scalar_prefetch = 0 : i64, scratch_operands = 0 : i64, tpu.core_type = #tpu.core_type<tc>, window_params = [{transform_indices = @transform_0, window_bounds = array<i64: 2, 16>}, {transform_indices = @transform_1, window_bounds = array<i64: 1, 2, 256>}, {transform_indices = @transform_2, window_bounds = array<i64: 1, 8, 256>}]} {
    %c0 = arith.constant 0 : index
    %c0_0 = arith.constant 0 : index
    %c0_1 = arith.constant 0 : index
    %0 = vector.load %arg3[%c0, %c0_0, %c0_1] : memref<1x2x256xf32, #tpu.memory_space<vmem>>, vector<1x2x256xf32>
    %1 = vector.shape_cast %0 : vector<1x2x256xf32> to vector<2x256xf32>
    %2 = vector.extract_strided_slice %1 {offsets = [0, 0], sizes = [1, 256], strides = [1, 1]} : vector<2x256xf32> to vector<1x256xf32>
    %3 = vector.extract_strided_slice %1 {offsets = [1, 0], sizes = [1, 256], strides = [1, 1]} : vector<2x256xf32> to vector<1x256xf32>
    %4 = arith.index_cast %arg0 : i32 to index
    %c0_2 = arith.constant 0 : index
    %5 = memref.load %arg2[%4, %c0_2] : memref<2x16xf32, #tpu.memory_space<smem>>
    %6 = arith.index_cast %arg0 : i32 to index
    %c1 = arith.constant 1 : index
    %7 = memref.load %arg2[%6, %c1] : memref<2x16xf32, #tpu.memory_space<smem>>
    %8 = arith.index_cast %arg0 : i32 to index
    %c2 = arith.constant 2 : index
    %9 = memref.load %arg2[%8, %c2] : memref<2x16xf32, #tpu.memory_space<smem>>
    %10 = arith.index_cast %arg0 : i32 to index
    %c3 = arith.constant 3 : index
    %11 = memref.load %arg2[%10, %c3] : memref<2x16xf32, #tpu.memory_space<smem>>
    %12 = arith.index_cast %arg0 : i32 to index
    %c4 = arith.constant 4 : index
    %13 = memref.load %arg2[%12, %c4] : memref<2x16xf32, #tpu.memory_space<smem>>
    %14 = arith.index_cast %arg0 : i32 to index
    %c5 = arith.constant 5 : index
    %15 = memref.load %arg2[%14, %c5] : memref<2x16xf32, #tpu.memory_space<smem>>
    %16 = arith.index_cast %arg0 : i32 to index
    %c6 = arith.constant 6 : index
    %17 = memref.load %arg2[%16, %c6] : memref<2x16xf32, #tpu.memory_space<smem>>
    %18 = arith.index_cast %arg0 : i32 to index
    %c7 = arith.constant 7 : index
    %19 = memref.load %arg2[%18, %c7] : memref<2x16xf32, #tpu.memory_space<smem>>
    %20 = arith.index_cast %arg0 : i32 to index
    %c8 = arith.constant 8 : index
    %21 = memref.load %arg2[%20, %c8] : memref<2x16xf32, #tpu.memory_space<smem>>
    %22 = arith.index_cast %arg0 : i32 to index
    %c9 = arith.constant 9 : index
    %23 = memref.load %arg2[%22, %c9] : memref<2x16xf32, #tpu.memory_space<smem>>
    %24 = arith.index_cast %arg0 : i32 to index
    %c10 = arith.constant 10 : index
    %25 = memref.load %arg2[%24, %c10] : memref<2x16xf32, #tpu.memory_space<smem>>
    %26 = arith.index_cast %arg0 : i32 to index
    %c11 = arith.constant 11 : index
    %27 = memref.load %arg2[%26, %c11] : memref<2x16xf32, #tpu.memory_space<smem>>
    %28 = arith.index_cast %arg0 : i32 to index
    %c12 = arith.constant 12 : index
    %29 = memref.load %arg2[%28, %c12] : memref<2x16xf32, #tpu.memory_space<smem>>
    %30 = arith.index_cast %arg0 : i32 to index
    %c13 = arith.constant 13 : index
    %31 = memref.load %arg2[%30, %c13] : memref<2x16xf32, #tpu.memory_space<smem>>
    %32 = arith.index_cast %arg0 : i32 to index
    %c14 = arith.constant 14 : index
    %33 = memref.load %arg2[%32, %c14] : memref<2x16xf32, #tpu.memory_space<smem>>
    %34 = arith.index_cast %arg0 : i32 to index
    %c15 = arith.constant 15 : index
    %35 = memref.load %arg2[%34, %c15] : memref<2x16xf32, #tpu.memory_space<smem>>
    %36 = vector.broadcast %33 : f32 to vector<1x256xf32>
    %37 = arith.subf %2, %36 : vector<1x256xf32>
    %38 = vector.broadcast %29 : f32 to vector<1x256xf32>
    %39 = arith.divf %37, %38 : vector<1x256xf32>
    %40 = vector.broadcast %35 : f32 to vector<1x256xf32>
    %41 = arith.subf %3, %40 : vector<1x256xf32>
    %42 = vector.broadcast %31 : f32 to vector<1x256xf32>
    %43 = arith.divf %41, %42 : vector<1x256xf32>
    %44 = vector.broadcast %5 : f32 to vector<1x256xf32>
    %45 = arith.mulf %44, %39 : vector<1x256xf32>
    %46 = vector.broadcast %7 : f32 to vector<1x256xf32>
    %47 = arith.mulf %46, %43 : vector<1x256xf32>
    %48 = arith.addf %45, %47 : vector<1x256xf32>
    %49 = vector.broadcast %9 : f32 to vector<1x256xf32>
    %50 = arith.addf %48, %49 : vector<1x256xf32>
    %51 = vector.broadcast %11 : f32 to vector<1x256xf32>
    %52 = arith.mulf %51, %39 : vector<1x256xf32>
    %53 = vector.broadcast %13 : f32 to vector<1x256xf32>
    %54 = arith.mulf %53, %43 : vector<1x256xf32>
    %55 = arith.addf %52, %54 : vector<1x256xf32>
    %56 = vector.broadcast %15 : f32 to vector<1x256xf32>
    %57 = arith.addf %55, %56 : vector<1x256xf32>
    %58 = vector.broadcast %17 : f32 to vector<1x256xf32>
    %59 = arith.mulf %58, %39 : vector<1x256xf32>
    %60 = vector.broadcast %19 : f32 to vector<1x256xf32>
    %61 = arith.mulf %60, %43 : vector<1x256xf32>
    %62 = arith.addf %59, %61 : vector<1x256xf32>
    %63 = vector.broadcast %21 : f32 to vector<1x256xf32>
    %64 = arith.addf %62, %63 : vector<1x256xf32>
    %65 = arith.mulf %5, %23 : f32
    %66 = arith.mulf %7, %25 : f32
    %67 = arith.addf %65, %66 : f32
    %68 = arith.mulf %9, %27 : f32
    %69 = arith.addf %67, %68 : f32
    %cst = arith.constant 0.000000e+00 : f32
    %70 = arith.subf %cst, %69 : f32
    %71 = arith.mulf %11, %23 : f32
    %72 = arith.mulf %13, %25 : f32
    %73 = arith.addf %71, %72 : f32
    %74 = arith.mulf %15, %27 : f32
    %75 = arith.addf %73, %74 : f32
    %cst_3 = arith.constant 0.000000e+00 : f32
    %76 = arith.subf %cst_3, %75 : f32
    %77 = arith.mulf %17, %23 : f32
    %78 = arith.mulf %19, %25 : f32
    %79 = arith.addf %77, %78 : f32
    %80 = arith.mulf %21, %27 : f32
    %81 = arith.addf %79, %80 : f32
    %cst_4 = arith.constant 0.000000e+00 : f32
    %82 = arith.subf %cst_4, %81 : f32
    %83 = arith.mulf %50, %50 : vector<1x256xf32>
    %84 = arith.mulf %57, %57 : vector<1x256xf32>
    %85 = arith.addf %83, %84 : vector<1x256xf32>
    %86 = arith.mulf %64, %64 : vector<1x256xf32>
    %87 = arith.addf %85, %86 : vector<1x256xf32>
    %cst_5 = arith.constant 1.000000e-24 : f32
    %88 = vector.broadcast %cst_5 : f32 to vector<1x256xf32>
    %89 = arith.maximumf %87, %88 : vector<1x256xf32>
    %90 = math.rsqrt %89 : vector<1x256xf32>
    %91 = vector.broadcast %70 : f32 to vector<1x256xf32>
    %92 = vector.broadcast %76 : f32 to vector<1x256xf32>
    %93 = vector.broadcast %82 : f32 to vector<1x256xf32>
    %94 = arith.mulf %50, %90 : vector<1x256xf32>
    %95 = arith.mulf %57, %90 : vector<1x256xf32>
    %96 = arith.mulf %64, %90 : vector<1x256xf32>
    %cst_6 = arith.constant 0.000000e+00 : f32
    %97 = vector.broadcast %cst_6 : f32 to vector<2x256xf32>
    %98 = tpu.concatenate %91, %92, %93, %94, %95, %96, %97 in 0 : vector<1x256xf32>, vector<1x256xf32>, vector<1x256xf32>, vector<1x256xf32>, vector<1x256xf32>, vector<1x256xf32>, vector<2x256xf32> -> vector<8x256xf32>
    %c0_7 = arith.constant 0 : index
    %c0_8 = arith.constant 0 : index
    %c0_9 = arith.constant 0 : index
    %99 = vector.load %arg4[%c0_7, %c0_8, %c0_9] : memref<1x8x256xf32, #tpu.memory_space<vmem>>, vector<1x8x256xf32>
    %100 = vector.shape_cast %99 : vector<1x8x256xf32> to vector<8x256xf32>
    %101 = vector.shape_cast %98 : vector<8x256xf32> to vector<1x8x256xf32>
    tpu.vector_store %arg4[%c0_7, %c0_8, %c0_9], %101 {strides = array<i32>} : memref<1x8x256xf32, #tpu.memory_space<vmem>>, vector<1x8x256xf32>,
    return
  }
  func.func @transform_0(%arg0: i32, %arg1: i32) -> (i32, i32) {
    %c0_i32 = arith.constant 0 : i32
    %c0_i32_0 = arith.constant 0 : i32
    %c0_i32_1 = arith.constant 0 : i32
    return %c0_i32, %c0_i32_0 : i32, i32
  }
  func.func @transform_1(%arg0: i32, %arg1: i32) -> (i32, i32, i32) {
    %c0_i32 = arith.constant 0 : i32
    %c0_i32_0 = arith.constant 0 : i32
    return %arg0, %c0_i32, %arg1 : i32, i32, i32
  }
  func.func @transform_2(%arg0: i32, %arg1: i32) -> (i32, i32, i32) {
    %c0_i32 = arith.constant 0 : i32
    %c0_i32_0 = arith.constant 0 : i32
    return %arg0, %c0_i32, %arg1 : i32, i32, i32
  }
}

</mosaic_0001>

<llo_original>
// kernel: tpu_custom_call.1
$region0: #{tpu_custom_call.1}
  #allocation0 [shape = 'u32[]', space=smem, size = 0x4, offset = 0x4, fixed_abs, tag = 'smem constant byte address 0x4 - core index']
  #allocation1 [shape = 'u32[144,128]{1,0:T(1,128)}', space=vmem, size = 0x12000, scoped, tag = 'internal scratch']
  %s0 = inlined_call_operand.hbm [shape: f32[2,16], index: 0, kind: input, shape index: {}]
  %s1 = inlined_call_operand.hbm [shape: f32[2,2,256], index: 1, kind: input, shape index: {}]
  %s2 = inlined_call_operand.hbm [shape: f32[2,8,256], index: 2, kind: output, shape index: {}]
  %s3 = sld [smem:[#allocation0]]
  $region49: #{tpu_custom_call.1} parent=0
    _
  %s5 = ssub.s32 1, %s3
  %s6 = scalar_select 0, %s5, %s3
  $region1: #{tpu_custom_call.1} parent=0
    #allocation2 [shape = 'u8[1024]{0}', space=smem, size = 0x400, scoped, tag = 'input window, operand 0, single buffered']
    #allocation3 [shape = 's32[2]{0}', space=sflag, size = 0x8, scoped, tag = 'scoped memory for tpu_custom_call.1']
    #allocation4 [shape = 's32[2]{0}', space=sflag, size = 0x8, scoped, tag = 'scoped memory for tpu_custom_call.1']
    #allocation5 [shape = 's32[2]{0}', space=sflag, size = 0x8, scoped, tag = 'scoped memory for tpu_custom_call.1']
    #allocation6 [shape = 'u8[4096]{0}', space=vmem, size = 0x1000, scoped, tag = 'input window, operand 1']
    #allocation7 [shape = 'u8[16384]{0}', space=vmem, size = 0x4000, scoped, tag = 'output window, operand 0']
    %7 = vsyncpa [#allocation5], 0
    %8 = vsyncpa [#allocation3], 0
    %s9 = scalar_lea.sflag [#allocation3], 1
    %10 = vsyncpa %s9, 0
    %11 = vsyncpa [#allocation4], 0
    %s12 = scalar_lea.sflag [#allocation4], 1
    %13 = vsyncpa %s12, 0
    loop: start=0, step=1, limit=4
    $region2: #{tpu_custom_call.1} parent=1 // loop_pre_header
      _
    $region3: #{tpu_custom_call.1} parent=1 // loop_header
      %s15 = sphi 0, %s19
      %p16 = scmp.ge.s32.totalorder %s15, 4
      %s22 = sphi 0, %s34
      %s23 = sphi 0, %s30
      %s24 = sphi 0, %s22
      %s25 = sphi 0, %s23
      %s26 = sphi 0, %s24
      %s27 = sphi 0, %s25
      %s35 = sphi 0, %s35
      %s37 = sphi 0, %s35
      %s38 = sphi 0, %s37
      %s52 = sphi 0, %s38
      %s60 = sphi 0, %s62
      %s63 = sphi 0, %s60
      %s64 = sphi 0, %s63
      %s80 = sphi 0, %s64
      %s88 = sphi 0, %s90
      %s91 = sphi 0, %s88
      %s92 = sphi 0, %s91
      %s108 = sphi 0, %s92
    $region4: #{tpu_custom_call.1} parent=1 // loop_header_branch
      %18 = sbr.rel (%p16) target = $region8
    $region5: #{tpu_custom_call.1} parent=1 // loop_body
      %s20 = ssub.s32 %s15, 1
      %s21 = ssub.s32 %s15, 2
      %s28 = sadd.s32 1, %s23
      %p29 = scmp.ge.s32.totalorder %s28, 1
      %s30 = scalar_select %p29, 0, %s28
      %s31 = sadd.s32 1, %s22
      %s32 = scalar_select %p29, %s31, %s22
      %p33 = scmp.ge.s32.totalorder %s32, 2
      %s34 = scalar_select %p33, 0, %s32
      %s36 = sadd.s32 %s35, 1
      %p39 = scmp.eq.s32.totalorder %s15, 1
      %p40 = scmp.ne.s32.totalorder %s35, %s37
      %p41 = scmp.eq.s32.totalorder %s15, 0
      %p42 = por %p40, %p41
      %p43 = scmp.ne.s32.totalorder %s35, %s37
      %p44 = scmp.eq.s32.totalorder %s20, 1
      %p45 = por %p43, %p44
      %p46 = scmp.ne.s32.totalorder %s37, %s38
      %p47 = scmp.eq.s32.totalorder %s20, 0
      %p48 = por %p46, %p47
      %p49 = scmp.ne.s32.totalorder %s37, %s38
      %p50 = scmp.eq.s32.totalorder %s21, 1
      %p51 = por %p49, %p50
      %p53 = scmp.ne.s32.totalorder %s38, %s52
      %p54 = scmp.eq.s32.totalorder %s21, 0
      %p55 = por %p53, %p54
      %s56 = ssub.s32 %s22, %s34
      %s57 = ssub.s32 %s23, %s30
      %s58 = sor.u32 %s56, %s57
      %p59 = scmp.eq.s32.totalorder %s58, 0
      %s61 = sadd.s32 %s60, 1
      %s62 = scalar_select %p59, %s60, %s61
      %p65 = pneg %p59
      %p66 = scmp.eq.s32.totalorder %s15, 1
      %p67 = por %p65, %p66
      %p68 = scmp.ne.s32.totalorder %s60, %s63
      %p69 = scmp.eq.s32.totalorder %s15, 0
      %p70 = por %p68, %p69
      %p71 = scmp.ne.s32.totalorder %s60, %s63
      %p72 = scmp.eq.s32.totalorder %s20, 1
      %p73 = por %p71, %p72
      %p74 = scmp.ne.s32.totalorder %s63, %s64
      %p75 = scmp.eq.s32.totalorder %s20, 0
      %p76 = por %p74, %p75
      %p77 = scmp.ne.s32.totalorder %s63, %s64
      %p78 = scmp.eq.s32.totalorder %s21, 1
      %p79 = por %p77, %p78
      %p81 = scmp.ne.s32.totalorder %s64, %s80
      %p82 = scmp.eq.s32.totalorder %s21, 0
      %p83 = por %p81, %p82
      %s84 = ssub.s32 %s22, %s34
      %s85 = ssub.s32 %s23, %s30
      %s86 = sor.u32 %s84, %s85
      %p87 = scmp.eq.s32.totalorder %s86, 0
      %s89 = sadd.s32 %s88, 1
      %s90 = scalar_select %p87, %s88, %s89
      %p93 = pneg %p87
      %p94 = scmp.eq.s32.totalorder %s15, 1
      %p95 = por %p93, %p94
      %p96 = scmp.ne.s32.totalorder %s88, %s91
      %p97 = scmp.eq.s32.totalorder %s15, 0
      %p98 = por %p96, %p97
      %p99 = scmp.ne.s32.totalorder %s88, %s91
      %p100 = scmp.eq.s32.totalorder %s20, 1
      %p101 = por %p99, %p100
      %p102 = scmp.ne.s32.totalorder %s91, %s92
      %p103 = scmp.eq.s32.totalorder %s20, 0
      %p104 = por %p102, %p103
      %p105 = scmp.ne.s32.totalorder %s91, %s92
      %p106 = scmp.eq.s32.totalorder %s21, 1
      %p107 = por %p105, %p106
      %p109 = scmp.ne.s32.totalorder %s92, %s108
      %p110 = scmp.eq.s32.totalorder %s21, 0
      %p111 = por %p109, %p110
      %p112 = scmp.le.s32.totalorder 1, %s15
      %p113 = scmp.lt.s32.totalorder %s15, 3
      %p114 = pnand %p112, %p113
      %p115 = pneg %p114
      // Predicated region
      $region9: #{tpu_custom_call.1} parent=5 // pred_check
        _
      $region10: #{tpu_custom_call.1} parent=5 // pred_check_branch
        %117 = sbr.rel (%p114) target = $region12
      $region11: #{tpu_custom_call.1} parent=5 // pred_region
        %s118 = ssub.s32 %s15, 1
        // Predicated region
        $region13: #{tpu_custom_call.1} parent=11 // pred_check
          %p119 = pneg %p48
        $region14: #{tpu_custom_call.1} parent=11 // pred_check_branch
          %121 = sbr.rel (%p119) target = $region16
        $region15: #{tpu_custom_call.1} parent=11 // pred_region
          %s123 = ssub.s32 32, 32
          %124 = vsyncadd [#allocation5], %s123
          %127 = dma.hbm_to_smem %s0, 32, [#allocation2], [#allocation5]
        $region16: #{tpu_custom_call.1} parent=11 // pred_fallthru
          _
      $region12: #{tpu_custom_call.1} parent=5 // pred_fallthru
        _
      %p128 = scmp.lt.s32.totalorder %s15, 2
      // Predicated region
      $region17: #{tpu_custom_call.1} parent=5 // pred_check
        %p129 = pneg %p128
      $region18: #{tpu_custom_call.1} parent=5 // pred_check_branch
        %131 = sbr.rel (%p129) target = $region20
      $region19: #{tpu_custom_call.1} parent=5 // pred_region
        // Predicated region
        $region21: #{tpu_custom_call.1} parent=19 // pred_check
          %p132 = pneg %p70
        $region22: #{tpu_custom_call.1} parent=19 // pred_check_branch
          %134 = sbr.rel (%p132) target = $region24
        $region23: #{tpu_custom_call.1} parent=19 // pred_region
          %s135 = sand.u32 %s60, 1
          %s136 = scalar_lea.sflag [#allocation3], %s135
          %s137 = sand.u32 %s60, 1
          %s138 = smul.addr %s137, 4
          %s139 = scalar_lea.vmem [#allocation6], %s138
          %s140 = smul.u32 2, %s23
          %s142 = ssub.s32 64, 64
          %143 = vsyncadd %s136, %s142
          %s144 = smul.addr %s22, 2
          %s145 = sadd.s32 %s140, %s144
          %s146 = smul.addr %s145, 32
          %s147 = scalar_lea.hbm %s1, %s146
          %s149 = sshll.u32 %s139, 4
          %s150 = int_to_ptr.vmem [resolvable:$true] %s149
          %152 = dma.hbm_to_vmem [thread:$0]  %s147, 64, %s150, %s136
        $region24: #{tpu_custom_call.1} parent=19 // pred_fallthru
          _
      $region20: #{tpu_custom_call.1} parent=5 // pred_fallthru
        _
      %p153 = scmp.le.s32.totalorder 1, %s15
      %p154 = scmp.lt.s32.totalorder %s15, 3
      %p155 = pnand %p153, %p154
      %p156 = pneg %p155
      // Predicated region
      $region25: #{tpu_custom_call.1} parent=5 // pred_check
        _
      $region26: #{tpu_custom_call.1} parent=5 // pred_check_branch
        %158 = sbr.rel (%p155) target = $region28
      $region27: #{tpu_custom_call.1} parent=5 // pred_region
        %s159 = ssub.s32 %s15, 1
        // Predicated region
        $region29: #{tpu_custom_call.1} parent=27 // pred_check
          %p160 = pneg %p48
        $region30: #{tpu_custom_call.1} parent=27 // pred_check_branch
          %162 = sbr.rel (%p160) target = $region32
        $region31: #{tpu_custom_call.1} parent=27 // pred_region
          %163 = dma.done [#allocation5], 32
        $region32: #{tpu_custom_call.1} parent=27 // pred_fallthru
          _
        %s164 = sand.u32 %s63, 1
        %s165 = scalar_lea.sflag [#allocation3], %s164
        %s166 = sand.u32 %s63, 1
        %s167 = smul.addr %s166, 4
        %s168 = scalar_lea.vmem [#allocation6], %s167
        // Predicated region
        $region33: #{tpu_custom_call.1} parent=27 // pred_check
          %p169 = pneg %p76
        $region34: #{tpu_custom_call.1} parent=27 // pred_check_branch
          %171 = sbr.rel (%p169) target = $region36
        $region35: #{tpu_custom_call.1} parent=27 // pred_region
          %172 = dma.done %s165, 64
        $region36: #{tpu_custom_call.1} parent=27 // pred_fallthru
          _
        %173 = sfence
        %p174 = pneg %p48
        %p175 = pneg %p45
        %s176 = sand.u32 %s63, 1
        %s177 = scalar_lea.sflag [#allocation3], %s176
        %s178 = sand.u32 %s63, 1
        %s179 = smul.addr %s178, 4
        %s180 = scalar_lea.vmem [#allocation6], %s179
        %p181 = pneg %p76
        %p182 = pneg %p73
        %p183 = pneg %p104
        %p184 = pneg %p101
        %s185 = sand.u32 %s91, 1
        %s186 = scalar_lea.sflag [#allocation4], %s185
        %s187 = sand.u32 %s91, 1
        %s188 = smul.addr %s187, 16
        %s189 = scalar_lea.vmem [#allocation7], %s188
        %s190 = smul.u32 2, %s25
        %s191 = smul.u32 2, %s25
        %v192 = vld [vmem:[%s168] sm:$0xf]
        %s193 = smul.u32 %s24, 128
        %s194 = sld [smem:[#allocation2 + %s193]]
        %s195 = sadd.s32 %s193, 1
        %s196 = sld [smem:[#allocation2 + %s195]]
        %s197 = sadd.s32 %s193, 2
        %s198 = sld [smem:[#allocation2 + %s197]]
        %s199 = sadd.s32 %s193, 3
        %s200 = sld [smem:[#allocation2 + %s199]]
        %s201 = sadd.s32 %s193, 4
        %s202 = sld [smem:[#allocation2 + %s201]]
        %s203 = sadd.s32 %s193, 5
        %s204 = sld [smem:[#allocation2 + %s203]]
        %s205 = sadd.s32 %s193, 6
        %s206 = sld [smem:[#allocation2 + %s205]]
        %s207 = sadd.s32 %s193, 7
        %s208 = sld [smem:[#allocation2 + %s207]]
        %s209 = sadd.s32 %s193, 8
        %s210 = sld [smem:[#allocation2 + %s209]]
        %s211 = sadd.s32 %s193, 9
        %s212 = sld [smem:[#allocation2 + %s211]]
        %s213 = sadd.s32 %s193, 10
        %s214 = sld [smem:[#allocation2 + %s213]]
        %s215 = sadd.s32 %s193, 11
        %s216 = sld [smem:[#allocation2 + %s215]]
        %s217 = sadd.s32 %s193, 12
        %s218 = sld [smem:[#allocation2 + %s217]]
        %s219 = sadd.s32 %s193, 13
        %s220 = sld [smem:[#allocation2 + %s219]]
        %s221 = sadd.s32 %s193, 14
        %s222 = sld [smem:[#allocation2 + %s221]]
        %s223 = sadd.s32 %s193, 15
        %s224 = sld [smem:[#allocation2 + %s223]]
        %v225 = vstv %s222
        %v226 = vsub.f32 %v192, %v225
        %v227 = vstv %s218
        %v228 = vrcp.pop %v227
        %v229 = vmul.f32 %v226, %v228
        %v230 = vstv %s224
        %v231 = vsub.f32 %v192, %v230
        %v232 = vstv %s220
        %v233 = vrcp.pop %v232
        %v234 = vmul.f32 %v231, %v233
        %v235 = vstv %s194
        %v236 = vmul.f32 %v235, %v229
        %v237 = vstv %s196
        %v238 = vmul.f32 %v237, %v234
        %v240 = vrot.slane %v238, 7
        %v241 = vrot.slane %v240, 2
        %v243 = vadd.f32 %v236, %v241
        %v244 = vstv %s198
        %v245 = vadd.f32 %v243, %v244
        %v246 = vstv %s200
        %v247 = vmul.f32 %v246, %v229
        %v248 = vstv %s202
        %v249 = vmul.f32 %v248, %v234
        %v251 = vrot.slane %v249, 7
        %v252 = vrot.slane %v251, 2
        %v254 = vadd.f32 %v247, %v252
        %v255 = vstv %s204
        %v256 = vadd.f32 %v254, %v255
        %v257 = vstv %s206
        %v258 = vmul.f32 %v257, %v229
        %v259 = vstv %s208
        %v260 = vmul.f32 %v259, %v234
        %v262 = vrot.slane %v260, 7
        %v263 = vrot.slane %v262, 2
        %v265 = vadd.f32 %v258, %v263
        %v266 = vstv %s210
        %v267 = vadd.f32 %v265, %v266
        %s268 = smul.f32 %s194, %s212
        %s269 = smul.f32 %s196, %s214
        %s270 = sadd.f32 %s268, %s269
        %s271 = smul.f32 %s198, %s216
        %s272 = sadd.f32 %s270, %s271
        %s273 = ssub.f32 0.0, %s272
        %s274 = smul.f32 %s200, %s212
        %s275 = smul.f32 %s202, %s214
        %s276 = sadd.f32 %s274, %s275
        %s277 = smul.f32 %s204, %s216
        %s278 = sadd.f32 %s276, %s277
        %s279 = ssub.f32 0.0, %s278
        %s280 = smul.f32 %s206, %s212
        %s281 = smul.f32 %s208, %s214
        %s282 = sadd.f32 %s280, %s281
        %s283 = smul.f32 %s210, %s216
        %s284 = sadd.f32 %s282, %s283
        %s285 = ssub.f32 0.0, %s284
        %v286 = vmul.f32 %v245, %v245
        %v287 = vmul.f32 %v256, %v256
        %v288 = vadd.f32 %v286, %v287
        %v289 = vmul.f32 %v267, %v267
        %v290 = vadd.f32 %v288, %v289
        %v291 = vmax.f32 %v290, 1e-24
        %v292 = vrsqrt.pop %v291
        %v293 = vstv %s273
        %v294 = vstv %s279
        %v295 = vstv %s285
        %v296 = vmul.f32 %v245, %v292
        %v297 = vmul.f32 %v256, %v292
        %v298 = vmul.f32 %v267, %v292
        %v300 = vlaneseq
        %v301 = vshrl.u32 %v300, 7
        %v302 = vsub.s32 0, %v301
        %v303 = vrot.slane %v296, %v302
        %v304 = vlaneseq
        %v305 = vshrl.u32 %v304, 7
        %v306 = vsub.s32 2, %v305
        %v307 = vrot.slane %v296, %v306
        %v311 = vlaneseq
        %v312 = vshrl.u32 %v311, 7
        %v313 = vsub.s32 0, %v312
        %v314 = vrot.slane %v297, %v313
        %v315 = vlaneseq
        %v316 = vshrl.u32 %v315, 7
        %v317 = vsub.s32 2, %v316
        %v318 = vrot.slane %v297, %v317
        %v322 = vlaneseq
        %v323 = vshrl.u32 %v322, 7
        %v324 = vsub.s32 0, %v323
        %v325 = vrot.slane %v298, %v324
        %v326 = vlaneseq
        %v327 = vshrl.u32 %v326, 7
        %v328 = vsub.s32 2, %v327
        %v329 = vrot.slane %v298, %v328
        %vm332 = vcmask 1040384
        %v333 = vsel %vm332, %v293, %v294
        %vm334 = vcmask 1041408
        %v335 = vsel %vm334, %v333, %v295
        %vm336 = vcmask 1042432
        %v337 = vsel %vm336, %v335, %v303
        %v338 = vsel %vm336, %v335, %v307
        %vm339 = vcmask 1043456
        %v340 = vsel %vm339, %v337, %v314
        %v341 = vsel %vm339, %v338, %v318
        %vm342 = vcmask 1044480
        %v343 = vsel %vm342, %v340, %v325
        %v344 = vsel %vm342, %v341, %v329
        %vm345 = vcmask 1045504
        %v346 = vsel %vm345, %v343, 0.0
        %v347 = vsel %vm345, %v344, 0.0
        %348 = vst [vmem:[%s189] sm:$0xff] %v346
        %349 = vst [vmem:[%s189 + $0x8] sm:$0xff] %v347
        %s350 = sand.u32 %s91, 1
        %s351 = scalar_lea.sflag [#allocation4], %s350
        %s352 = sand.u32 %s91, 1
        %s353 = smul.addr %s352, 16
        %s354 = scalar_lea.vmem [#allocation7], %s353
        // Predicated region
        $region37: #{tpu_custom_call.1} parent=27 // pred_check
          %p355 = pneg %p101
        $region38: #{tpu_custom_call.1} parent=27 // pred_check_branch
          %357 = sbr.rel (%p355) target = $region40
        $region39: #{tpu_custom_call.1} parent=27 // pred_region
          %s358 = smul.u32 2, %s25
          %s360 = ssub.s32 256, 256
          %361 = vsyncadd %s351, %s360
          %s362 = smul.addr %s24, 2
          %s363 = sadd.s32 %s358, %s362
          %s364 = smul.addr %s363, 128
          %s365 = scalar_lea.hbm %s2, %s364
          %s367 = sshll.u32 %s354, 4
          %s368 = int_to_ptr.vmem [resolvable:$true] %s367
          %370 = dma.vmem_to_hbm [thread:$0]  %s368, 256, %s365, %s351
        $region40: #{tpu_custom_call.1} parent=27 // pred_fallthru
          _
      $region28: #{tpu_custom_call.1} parent=5 // pred_fallthru
        _
      %p371 = scmp.le.s32.totalorder 2, %s15
      // Predicated region
      $region41: #{tpu_custom_call.1} parent=5 // pred_check
        %p372 = pneg %p371
      $region42: #{tpu_custom_call.1} parent=5 // pred_check_branch
        %374 = sbr.rel (%p372) target = $region44
      $region43: #{tpu_custom_call.1} parent=5 // pred_region
        %s375 = ssub.s32 %s15, 2
        // Predicated region
        $region45: #{tpu_custom_call.1} parent=43 // pred_check
          %p376 = pneg %p107
        $region46: #{tpu_custom_call.1} parent=43 // pred_check_branch
          %378 = sbr.rel (%p376) target = $region48
        $region47: #{tpu_custom_call.1} parent=43 // pred_region
          %s379 = sand.u32 %s92, 1
          %s380 = scalar_lea.sflag [#allocation4], %s379
          %s381 = sand.u32 %s92, 1
          %s382 = smul.addr %s381, 16
          %s383 = scalar_lea.vmem [#allocation7], %s382
          %384 = dma.done %s380, 256
        $region48: #{tpu_custom_call.1} parent=43 // pred_fallthru
          _
      $region44: #{tpu_custom_call.1} parent=5 // pred_fallthru
        _
    $region6: #{tpu_custom_call.1} parent=1 // loop_footer
      %s19 = sadd.s32 1, %s15
    $region7: #{tpu_custom_call.1} parent=1 // loop_footer_branch
      %14 = sbr.rel target = $region3
    $region8: #{tpu_custom_call.1} parent=1 // loop_exit
      _
    %385 = vsyncpa [#allocation3], 1
    %s386 = scalar_lea.sflag [#allocation3], 1
    %387 = vsyncpa %s386, 1
    %388 = vsyncpa [#allocation4], 1
    %s389 = scalar_lea.sflag [#allocation4], 1
    %390 = vsyncpa %s389, 1
    %391 = vsyncpa [#allocation5], 1
    %s392 = scalar_lea.sflag [#allocation5], 1
    %393 = vsyncpa %s392, 1

</llo_original>
